<compile_context>
chip_gen: v5e
topology: v5e:2x2
jax: 0.10.0
libtpu: 0.0.40
codegen_flags: <defaults>
</compile_context>

<pallas_src>
import functools

import jax
import jax.numpy as jnp
from jax import lax
from jax.experimental import pallas as pl
from jax.experimental.pallas import tpu as pltpu


def _round_up(n, m):
    return ((n + m - 1) // m) * m


def _swish(h):
    # swish(h) = h * sigmoid(h);  sigmoid(h) = 0.5 * (1 + tanh(0.5 * h))
    # -> a single EUP op per element (tanh), VPU handles the rest.
    return h * (0.5 * (1.0 + jnp.tanh(0.5 * h)))


def _ebm_kernel(x_ref, w1a_ref, w2t_ref, vec_ref, o_ref, *, H, HA):
    cdt = w1a_ref.dtype
    xb = x_ref[...].astype(cdt)                       # [TB, D] bf16 (binary -> exact)

    # Fused first layer + Bernoulli base log-prob, lane-dense [HA, TB] result:
    #   rows 0..H-1 of w1a = w1^T, row H = delta_hi, row H+1 = delta_lo, rest 0
    #   bias col 0 of vec  = b1,   row H = sum(log1p(-m)) + b3,          rest 0
    h_aug = lax.dot_general(
        w1a_ref[...], xb,
        dimension_numbers=(((1,), (1,)), ((), ())),   # (HA,D) x (TB,D)^T
        preferred_element_type=jnp.float32)
    h_aug = h_aug + vec_ref[:, 0:1]                   # [HA, TB] f32

    h1 = _swish(h_aug[:H, :])                         # [H, TB] (8-aligned slice)
    # bd: 8-row-aligned sublane reduce; only the hi/lo delta rows are nonzero.
    bd = jnp.sum(h_aug[H:HA, :], axis=0, keepdims=True)   # [1, TB]

    h2 = jnp.dot(w2t_ref[...], h1.astype(cdt),
                 preferred_element_type=jnp.float32) + vec_ref[:H, 1:2]
    h2 = _swish(h2)

    # Final Linear(H, 1): VPU multiply + sublane reduce (no N=1 MXU matmul).
    logp = jnp.sum(h2 * vec_ref[:H, 2:3], axis=0, keepdims=True)   # [1, TB]

    o_ref[...] = logp + bd                            # lane-dense f32 store


def prepare_ebm_params(params, mean, compute_dtype=jnp.bfloat16):
    """One-time (per training run) preprocessing of the EBM parameters."""
    w1, b1, w2, b2, w3, b3 = params
    D, H = w1.shape
    HA = _round_up(H + 2, 8)                          # + delta_hi + delta_lo rows

    b3s = jnp.reshape(jnp.asarray(b3, jnp.float32), ())
    if mean is None:                                  # module's mean=None path: bd = 0
        delta = jnp.zeros((D,), jnp.float32)
        const = b3s
    else:
        # NOTE: clipping changes semantics vs torch.Bernoulli only for mean
        # exactly 0/1 with disagreeing x (PyTorch would yield -inf).
        m = jnp.clip(jnp.asarray(mean, jnp.float32).reshape(-1), 1e-6, 1.0 - 1e-6)
        log_1m = jnp.log1p(-m)
        delta = jnp.log(m) - log_1m                   # [D] log-odds
        const = jnp.sum(log_1m) + b3s                 # scalar

    delta_hi = delta.astype(compute_dtype)
    delta_lo = (delta - delta_hi.astype(jnp.float32)).astype(compute_dtype)

    w1a = jnp.zeros((HA, D), jnp.float32).at[:H].set(jnp.asarray(w1, jnp.float32).T)
    w1a = w1a.astype(compute_dtype)
    w1a = w1a.at[H].set(delta_hi).at[H + 1].set(delta_lo)

    # One resident column slab for all small vectors: [b1|const, b2, w3].
    vecs = jnp.zeros((HA, 3), jnp.float32)
    vecs = vecs.at[:H, 0].set(jnp.asarray(b1, jnp.float32).reshape(-1))
    vecs = vecs.at[H, 0].set(const)
    vecs = vecs.at[:H, 1].set(jnp.asarray(b2, jnp.float32).reshape(-1))
    vecs = vecs.at[:H, 2].set(jnp.asarray(w3, jnp.float32).reshape(-1))

    return dict(
        D=D, H=H, HA=HA,
        w1a=w1a,
        w2t=jnp.asarray(w2, jnp.float32).T.astype(compute_dtype),
        vecs=vecs,
    )


def _choose_tile(B):
    """Batch-tile (lane) width: big enough to amortize per-step overhead,
    capped so the parallel grid keeps >= ~4 steps, 512-aligned for v5e/v6e/v7x."""
    if B <= 512:
        return _round_up(max(B, 1), 8)
    return min(8192, _round_up(pl.cdiv(B, 4), 512))


def ebm_forward(x, prep, *, batch_tile=None):
    """x: [B, D] float (binary values). Returns [B] float32."""
    B, D = x.shape
    H, HA = prep["H"], prep["HA"]
    assert D == prep["D"]

    TB = batch_tile if batch_tile is not None else _choose_tile(B)
    B_pad = _round_up(B, TB)
    if B_pad != B:                                    # ragged trailing tile only
        x = jnp.pad(x, ((0, B_pad - B), (0, 0)))

    grid = (B_pad // TB,)
    w_bytes = jnp.dtype(prep["w1a"].dtype).itemsize
    cost = pl.CostEstimate(
        flops=int(2 * B_pad * (HA * D + H * H) + 2 * B_pad * H),
        transcendentals=int(2 * B_pad * H),
        bytes_accessed=int(B_pad * D * x.dtype.itemsize
                           + (HA * D + H * H) * w_bytes
                           + HA * 3 * 4 + B_pad * 4),
    )

    out = pl.pallas_call(
        functools.partial(_ebm_kernel, H=H, HA=HA),
        out_shape=jax.ShapeDtypeStruct((1, B_pad), jnp.float32),
        grid=grid,
        in_specs=[
            pl.BlockSpec((TB, D), lambda i: (i, 0)),   # x tile (pipelined DMA)
            pl.BlockSpec((HA, D), lambda i: (0, 0)),   # resident fused w1^T + delta
            pl.BlockSpec((H, H), lambda i: (0, 0)),    # resident w2^T
            pl.BlockSpec((HA, 3), lambda i: (0, 0)),   # resident [b1|const, b2, w3]
        ],
        out_specs=pl.BlockSpec((1, TB), lambda i: (0, i)),
        compiler_params=pltpu.CompilerParams(
            dimension_semantics=("parallel",)),        # shards over v7x's 2 TCs
        cost_estimate=cost,
    )(x, prep["w1a"], prep["w2t"], prep["vecs"])

    return out[0, :B]                                  # .squeeze() -> [B]


def _init_params(key, D, H):
    k1, k2, k3, k4, k5, k6 = jax.random.split(key, 6)
    w1 = jax.random.normal(k1, (D, H), jnp.float32) * (1.0 / jnp.sqrt(D))
    b1 = 0.1 * jax.random.normal(k4, (H,), jnp.float32)
    w2 = jax.random.normal(k2, (H, H), jnp.float32) * (1.0 / jnp.sqrt(H))
    b2 = 0.1 * jax.random.normal(k5, (H,), jnp.float32)
    w3 = jax.random.normal(k3, (H, 1), jnp.float32) * (1.0 / jnp.sqrt(H))
    b3 = 0.1 * jax.random.normal(k6, (1,), jnp.float32)
    return (w1, b1, w2, b2, w3, b3)


if __name__ == "__main__":
    B, D, H = 8, 32, 32
    key = jax.random.PRNGKey(0)
    kx, km, kp = jax.random.split(key, 3)

    # Binary data (as in the discrete EBM training script) and a data mean in (0,1).
    x = jax.random.bernoulli(kx, 0.5, (B, D)).astype(jnp.float32)
    mean = jnp.clip(jax.random.uniform(km, (D,), jnp.float32), 0.05, 0.95)
    params = _init_params(kp, D, H)

    # Hoisted one-time preprocessing (log-odds hi/lo split, fused/padded weights).
    prep = prepare_ebm_params(params, mean)

    out = ebm_forward(x, prep)
    out = jax.block_until_ready(out)

    # Pure-JAX f32 reference (original module semantics).
    w1, b1, w2, b2, w3, b3 = params
    bd_ref = jnp.sum(x * jnp.log(mean) + (1.0 - x) * jnp.log1p(-mean), axis=-1)
    h1 = x @ w1 + b1
    h1 = h1 * jax.nn.sigmoid(h1)
    h2 = h1 @ w2 + b2
    h2 = h2 * jax.nn.sigmoid(h2)
    ref = (h2 @ w3 + b3)[:, 0] + bd_ref

    assert out.shape == (B,)
    # bf16 MXU inputs -> small rounding vs. pure-f32 reference.
    assert jnp.allclose(out, ref, atol=5e-2, rtol=5e-2), float(
        jnp.max(jnp.abs(out - ref)))
    print("KERNEL_OK")
</pallas_src>

<mosaic_0001>
module attributes {stable_mosaic.version = 11 : i64} {
  func.func @_ebm_kernel(%arg0: i32, %arg1: memref<8x32xf32, #tpu.memory_space<vmem>>, %arg2: memref<40x32xbf16, #tpu.memory_space<vmem>>, %arg3: memref<32x32xbf16, #tpu.memory_space<vmem>>, %arg4: memref<40x3xf32, #tpu.memory_space<vmem>>, %arg5: memref<1x8xf32, #tpu.memory_space<vmem>>) attributes {dimension_semantics = [#tpu.dimension_semantics<parallel>], iteration_bounds = array<i64: 1>, scalar_prefetch = 0 : i64, scratch_operands = 0 : i64, tpu.core_type = #tpu.core_type<tc>, window_params = [{transform_indices = @transform_0, window_bounds = array<i64: 8, 32>}, {pipeline_mode = #tpu.pipeline_mode<synchronous>, transform_indices = @transform_1, window_bounds = array<i64: 40, 32>}, {pipeline_mode = #tpu.pipeline_mode<synchronous>, transform_indices = @transform_2, window_bounds = array<i64: 32, 32>}, {pipeline_mode = #tpu.pipeline_mode<synchronous>, transform_indices = @transform_3, window_bounds = array<i64: 40, 3>}, {transform_indices = @transform_4, window_bounds = array<i64: 1, 8>}]} {
    %c0 = arith.constant 0 : index
    %c0_0 = arith.constant 0 : index
    %0 = vector.load %arg1[%c0, %c0_0] : memref<8x32xf32, #tpu.memory_space<vmem>>, vector<8x32xf32>
    %1 = arith.truncf %0 : vector<8x32xf32> to vector<8x32xbf16>
    %c0_1 = arith.constant 0 : index
    %c0_2 = arith.constant 0 : index
    %2 = vector.load %arg2[%c0_1, %c0_2] : memref<40x32xbf16, #tpu.memory_space<vmem>>, vector<40x32xbf16>
    %cst = arith.constant dense<0.000000e+00> : vector<40x8xf32>
    %3 = tpu.matmul %2, %1, %cst {dimension_numbers = #tpu.dot_dimension_numbers<[1], [1], [0], [0], [0, 0, 1, 0], [], []>} : vector<40x32xbf16>, vector<8x32xbf16>, vector<40x8xf32> -> vector<40x8xf32>
    %c0_3 = arith.constant 0 : index
    %c0_4 = arith.constant 0 : index
    %4 = vector.load %arg4[%c0_3, %c0_4] : memref<40x3xf32, #tpu.memory_space<vmem>>, vector<40x1xf32>
    %5 = vector.broadcast %4 : vector<40x1xf32> to vector<40x8xf32>
    %6 = arith.addf %3, %5 : vector<40x8xf32>
    %7 = vector.extract_strided_slice %6 {offsets = [0, 0], sizes = [32, 8], strides = [1, 1]} : vector<40x8xf32> to vector<32x8xf32>
    %cst_5 = arith.constant 5.000000e-01 : f32
    %8 = vector.broadcast %cst_5 : f32 to vector<32x8xf32>
    %9 = arith.mulf %8, %7 : vector<32x8xf32>
    %10 = math.tanh %9 : vector<32x8xf32>
    %cst_6 = arith.constant 1.000000e+00 : f32
    %11 = vector.broadcast %cst_6 : f32 to vector<32x8xf32>
    %12 = arith.addf %11, %10 : vector<32x8xf32>
    %cst_7 = arith.constant 5.000000e-01 : f32
    %13 = vector.broadcast %cst_7 : f32 to vector<32x8xf32>
    %14 = arith.mulf %13, %12 : vector<32x8xf32>
    %15 = arith.mulf %7, %14 : vector<32x8xf32>
    %16 = vector.extract_strided_slice %6 {offsets = [32, 0], sizes = [8, 8], strides = [1, 1]} : vector<40x8xf32> to vector<8x8xf32>
    %cst_8 = arith.constant dense<0.000000e+00> : vector<8xf32>
    %17 = vector.multi_reduction <add>, %16, %cst_8 [0] : vector<8x8xf32> to vector<8xf32>
    %18 = vector.shape_cast %17 : vector<8xf32> to vector<1x8xf32>
    %c0_9 = arith.constant 0 : index
    %c0_10 = arith.constant 0 : index
    %19 = vector.load %arg3[%c0_9, %c0_10] : memref<32x32xbf16, #tpu.memory_space<vmem>>, vector<32x32xbf16>
    %20 = arith.truncf %15 : vector<32x8xf32> to vector<32x8xbf16>
    %cst_11 = arith.constant dense<0.000000e+00> : vector<32x8xf32>
    %21 = tpu.matmul %19, %20, %cst_11 {dimension_numbers = #tpu.dot_dimension_numbers<[1], [0], [0], [1], [0, 0, 1, 1], [], []>} : vector<32x32xbf16>, vector<32x8xbf16>, vector<32x8xf32> -> vector<32x8xf32>
    %c0_12 = arith.constant 0 : index
    %c1 = arith.constant 1 : index
    %22 = vector.load %arg4[%c0_12, %c1] : memref<40x3xf32, #tpu.memory_space<vmem>>, vector<32x1xf32>
    %23 = vector.broadcast %22 : vector<32x1xf32> to vector<32x8xf32>
    %24 = arith.addf %21, %23 : vector<32x8xf32>
    %cst_13 = arith.constant 5.000000e-01 : f32
    %25 = vector.broadcast %cst_13 : f32 to vector<32x8xf32>
    %26 = arith.mulf %25, %24 : vector<32x8xf32>
    %27 = math.tanh %26 : vector<32x8xf32>
    %cst_14 = arith.constant 1.000000e+00 : f32
    %28 = vector.broadcast %cst_14 : f32 to vector<32x8xf32>
    %29 = arith.addf %28, %27 : vector<32x8xf32>
    %cst_15 = arith.constant 5.000000e-01 : f32
    %30 = vector.broadcast %cst_15 : f32 to vector<32x8xf32>
    %31 = arith.mulf %30, %29 : vector<32x8xf32>
    %32 = arith.mulf %24, %31 : vector<32x8xf32>
    %c0_16 = arith.constant 0 : index
    %c2 = arith.constant 2 : index
    %33 = vector.load %arg4[%c0_16, %c2] : memref<40x3xf32, #tpu.memory_space<vmem>>, vector<32x1xf32>
    %34 = vector.broadcast %33 : vector<32x1xf32> to vector<32x8xf32>
    %35 = arith.mulf %32, %34 : vector<32x8xf32>
    %cst_17 = arith.constant dense<0.000000e+00> : vector<8xf32>
    %36 = vector.multi_reduction <add>, %35, %cst_17 [0] : vector<32x8xf32> to vector<8xf32>
    %37 = vector.shape_cast %36 : vector<8xf32> to vector<1x8xf32>
    %38 = arith.addf %37, %18 : vector<1x8xf32>
    %c0_18 = arith.constant 0 : index
    %c0_19 = arith.constant 0 : index
    %39 = vector.load %arg5[%c0_18, %c0_19] : memref<1x8xf32, #tpu.memory_space<vmem>>, vector<1x8xf32>
    tpu.vector_store %arg5[%c0_18, %c0_19], %38 {strides = array<i32>} : memref<1x8xf32, #tpu.memory_space<vmem>>, vector<1x8xf32>,
    return
  }
  func.func @transform_0(%arg0: i32) -> (i32, i32) {
    %c0_i32 = arith.constant 0 : i32
    %c0_i32_0 = arith.constant 0 : i32
    return %arg0, %c0_i32 : i32, i32
  }
  func.func @transform_1(%arg0: i32) -> (i32, i32) {
    %c0_i32 = arith.constant 0 : i32
    %c0_i32_0 = arith.constant 0 : i32
    %c0_i32_1 = arith.constant 0 : i32
    return %c0_i32, %c0_i32_0 : i32, i32
  }
  func.func @transform_2(%arg0: i32) -> (i32, i32) {
    %c0_i32 = arith.constant 0 : i32
    %c0_i32_0 = arith.constant 0 : i32
    %c0_i32_1 = arith.constant 0 : i32
    return %c0_i32, %c0_i32_0 : i32, i32
  }
  func.func @transform_3(%arg0: i32) -> (i32, i32) {
    %c0_i32 = arith.constant 0 : i32
    %c0_i32_0 = arith.constant 0 : i32
    %c0_i32_1 = arith.constant 0 : i32
    return %c0_i32, %c0_i32_0 : i32, i32
  }
  func.func @transform_4(%arg0: i32) -> (i32, i32) {
    %c0_i32 = arith.constant 0 : i32
    %c0_i32_0 = arith.constant 0 : i32
    return %c0_i32, %arg0 : i32, i32
  }
}

</mosaic_0001>

<llo_original>
// kernel: tpu_custom_call.1
$region0: #{tpu_custom_call.1}
  #allocation0 [shape = 'u32[]', space=smem, size = 0x4, offset = 0x4, fixed_abs, tag = 'smem constant byte address 0x4 - core index']
  #allocation1 [shape = 'u32[72,128]{1,0:T(1,128)}', space=vmem, size = 0x9000, scoped, tag = 'internal scratch']
  %s0 = inlined_call_operand.vmem [shape: f32[8,32], index: 0, kind: input, shape index: {}]
  %s1 = inlined_call_operand.vmem [shape: bf16[40,32], index: 1, kind: input, shape index: {}]
  %s2 = inlined_call_operand.vmem [shape: bf16[32,32], index: 2, kind: input, shape index: {}]
  %s3 = inlined_call_operand.vmem [shape: f32[40,3], index: 3, kind: input, shape index: {}]
  %s4 = inlined_call_operand.hbm [shape: f32[1,8], index: 4, kind: output, shape index: {}]
  %s5 = sld [smem:[#allocation0]]
  $region26: #{tpu_custom_call.1} parent=0
    _
  %s7 = ssub.s32 1, %s5
  %s8 = scalar_select 0, %s7, %s5
  $region1: #{tpu_custom_call.1} parent=0
    #allocation2 [shape = 'u8[512]{0}', space=vmem, size = 0x400, scoped, tag = 'output window, operand 0, single buffered']
    #allocation3 [shape = 's32[1]{0}', space=sflag, size = 0x4, scoped, tag = 'scoped memory for tpu_custom_call.1']
    %9 = vsyncpa [#allocation3], 0
    // Predicated region
    $region2: #{tpu_custom_call.1} parent=1 // pred_check
      _
    $region3: #{tpu_custom_call.1} parent=1 // pred_check_branch
      %11 = sbr.rel (0) target = $region5
    $region4: #{tpu_custom_call.1} parent=1 // pred_region
      _
    $region5: #{tpu_custom_call.1} parent=1 // pred_fallthru
      _
    // Predicated region
    $region6: #{tpu_custom_call.1} parent=1 // pred_check
      _
    $region7: #{tpu_custom_call.1} parent=1 // pred_check_branch
      %13 = sbr.rel (0) target = $region9
    $region8: #{tpu_custom_call.1} parent=1 // pred_region
      _
    $region9: #{tpu_custom_call.1} parent=1 // pred_fallthru
      _
    // Predicated region
    $region10: #{tpu_custom_call.1} parent=1 // pred_check
      _
    $region11: #{tpu_custom_call.1} parent=1 // pred_check_branch
      %15 = sbr.rel (0) target = $region13
    $region12: #{tpu_custom_call.1} parent=1 // pred_region
      _
    $region13: #{tpu_custom_call.1} parent=1 // pred_fallthru
      _
    // Predicated region
    $region14: #{tpu_custom_call.1} parent=1 // pred_check
      _
    $region15: #{tpu_custom_call.1} parent=1 // pred_check_branch
      %17 = sbr.rel (0) target = $region17
    $region16: #{tpu_custom_call.1} parent=1 // pred_region
      _
    $region17: #{tpu_custom_call.1} parent=1 // pred_fallthru
      _
    %v19 = vld [vmem:[%s0] sm:$0xff]
    %v20 = vpack.c.bf16 %v19, %v19
    %v21 = vld [vmem:[%s1] sm:$0xf]
    %v22 = vld [vmem:[%s1 + $0x4] sm:$0xf]
    %v23 = vld [vmem:[%s1 + $0x8] sm:$0xf]
    %v24 = vld [vmem:[%s1 + $0xc] sm:$0xf]
    %v25 = vld [vmem:[%s1 + $0x10] sm:$0xf]
    %v26 = vld [vmem:[%s3] sm:$0xff]
    %v27 = vld [vmem:[%s3 + $0x8] sm:$0xff]
    %v28 = vld [vmem:[%s3 + $0x10] sm:$0xff]
    %v29 = vld [vmem:[%s3 + $0x18] sm:$0xff]
    %v30 = vld [vmem:[%s3 + $0x20] sm:$0xff]
    %32 = vset.pattern.permute.xlu0 0
    %33 = vperm.xlu0 %32, %v26
    %v34 = vpop.permute.xlu0 %33
    %37 = vset.pattern.permute.xlu0 0
    %38 = vperm.xlu0 %37, %v27
    %v39 = vpop.permute.xlu0 %38
    %42 = vset.pattern.permute.xlu0 0
    %43 = vperm.xlu0 %42, %v28
    %v44 = vpop.permute.xlu0 %43
    %47 = vset.pattern.permute.xlu0 0
    %48 = vperm.xlu0 %47, %v29
    %v49 = vpop.permute.xlu0 %48
    %52 = vset.pattern.permute.xlu0 0
    %53 = vperm.xlu0 %52, %v30
    %v54 = vpop.permute.xlu0 %53
    %v61 = vunpack.c.l.b16 %v21
    %v62 = vunpack.c.l.b16 %v22
    %v63 = vunpack.c.l.b16 %v23
    %v64 = vunpack.c.l.b16 %v24
    %v65 = vunpack.c.l.b16 %v25
    %v66 = vpack.c.b16 %v62, %v61
    %v67 = vpack.c.b16 %v64, %v63
    %v68 = vpack.c.b16 %v65, %v65
    %vm69 = vcmask 261120
    %v71 = vsel %vm69, %v66, 0
    %v74 = vsel %vm69, %v67, 0
    %v77 = vsel %vm69, %v68, 0
    %v80 = vsel %vm69, %v20, 0
    %82 = vmatpush.bf16.xpose.msra.mxu0 0
    %83 = vmatpush.bf16.xpose.msra.mxu0 0
    %84 = vmatpush.bf16.xpose.msra.mxu0 0
    %85 = vmatpush.bf16.xpose.msra.mxu0 0
    %86 = vmatpush.bf16.xpose.msra.mxu0 0
    %87 = vmatpush.bf16.xpose.msra.mxu0 0
    %88 = vmatpush.bf16.xpose.msra.mxu0 0
    %89 = vmatpush.bf16.xpose.msra.mxu0 %v80
    %90 = vmatmul.bf16.gmra.mxu0 %v71
    %v91 = vpop.f32.mrf.mxu0
    %v92 = vadd.f32 %v34, %v91
    %v93 = vpop.f32.mrf.mxu0
    %v94 = vadd.f32 %v39, %v93
    %95 = vmatmul.bf16.gmra.mxu0 %v74
    %v96 = vpop.f32.mrf.mxu0
    %v97 = vadd.f32 %v44, %v96
    %v98 = vpop.f32.mrf.mxu0
    %v99 = vadd.f32 %v49, %v98
    %100 = vmatmul.bf16.gmra.mxu0 %v77
    %v101 = vpop.f32.mrf.mxu0
    %v102 = vadd.f32 %v54, %v101
    %v103 = vpop.f32.mrf.mxu0
    %104 = vdwg.mxu0
    %v105 = vmul.f32 %v92, 0.5
    %v106 = vmul.f32 %v94, 0.5
    %v107 = vmul.f32 %v97, 0.5
    %v108 = vmul.f32 %v99, 0.5
    %v109 = vtanh.pop %v105
    %v110 = vtanh.pop %v106
    %v111 = vtanh.pop %v107
    %v112 = vtanh.pop %v108
    %v113 = vadd.f32 %v109, 1.0
    %v114 = vadd.f32 %v110, 1.0
    %v115 = vadd.f32 %v111, 1.0
    %v116 = vadd.f32 %v112, 1.0
    %v117 = vmul.f32 %v113, 0.5
    %v118 = vmul.f32 %v114, 0.5
    %v119 = vmul.f32 %v115, 0.5
    %v120 = vmul.f32 %v116, 0.5
    %v121 = vmul.f32 %v92, %v117
    %v122 = vmul.f32 %v94, %v118
    %v123 = vmul.f32 %v97, %v119
    %v124 = vmul.f32 %v99, %v120
    %vm125 = vcmask 64512
    %v126 = vsel %vm125, %v102, 0.0
    %v127 = vrot.slane %v126, 4
    %v128 = vadd.f32 %v126, %v127
    %v129 = vrot.slane %v128, 2
    %v130 = vadd.f32 %v128, %v129
    %v131 = vrot.slane %v130, 1
    %v132 = vadd.f32 %v130, %v131
    %v133 = vld [vmem:[%s2] sm:$0xf]
    %v134 = vld [vmem:[%s2 + $0x4] sm:$0xf]
    %v135 = vld [vmem:[%s2 + $0x8] sm:$0xf]
    %v136 = vld [vmem:[%s2 + $0xc] sm:$0xf]
    %v137 = vpack.c.bf16 %v122, %v121
    %v138 = vpack.c.bf16 %v124, %v123
    %v139 = vld [vmem:[%s3] sm:$0xff]
    %v140 = vld [vmem:[%s3 + $0x8] sm:$0xff]
    %v141 = vld [vmem:[%s3 + $0x10] sm:$0xff]
    %v142 = vld [vmem:[%s3 + $0x18] sm:$0xff]
    %144 = vset.pattern.permute.xlu0 1
    %145 = vperm.xlu0 %144, %v139
    %v146 = vpop.permute.xlu0 %145
    %149 = vset.pattern.permute.xlu0 1
    %150 = vperm.xlu0 %149, %v140
    %v151 = vpop.permute.xlu0 %150
    %154 = vset.pattern.permute.xlu0 1
    %155 = vperm.xlu0 %154, %v141
    %v156 = vpop.permute.xlu0 %155
    %159 = vset.pattern.permute.xlu0 1
    %160 = vperm.xlu0 %159, %v142
    %v161 = vpop.permute.xlu0 %160
    %v167 = vunpack.c.l.b16 %v133
    %v168 = vunpack.c.l.b16 %v134
    %v169 = vunpack.c.l.b16 %v135
    %v170 = vunpack.c.l.b16 %v136
    %v171 = vpack.c.b16 %v168, %v167
    %v172 = vpack.c.b16 %v170, %v169
    %v174 = vsel %vm69, %v171, 0
    %v177 = vsel %vm69, %v172, 0
    %179 = vmatpush.bf16.msra.mxu0 0
    %180 = vmatpush.bf16.msra.mxu0 0
    %181 = vmatpush.bf16.msra.mxu0 0
    %182 = vmatpush.bf16.msra.mxu0 0
    %183 = vmatpush.bf16.msra.mxu0 0
    %184 = vmatpush.bf16.msra.mxu0 0
    %185 = vmatpush.bf16.msra.mxu0 %v138
    %186 = vmatpush.bf16.msra.mxu0 %v137
    %187 = vmatmul.bf16.gmra.mxu0 %v174
    %v188 = vpop.f32.mrf.mxu0
    %v189 = vadd.f32 %v146, %v188
    %v190 = vpop.f32.mrf.mxu0
    %v191 = vadd.f32 %v151, %v190
    %192 = vmatmul.bf16.gmra.mxu0 %v177
    %v193 = vpop.f32.mrf.mxu0
    %v194 = vadd.f32 %v156, %v193
    %v195 = vpop.f32.mrf.mxu0
    %v196 = vadd.f32 %v161, %v195
    %197 = vdwg.mxu0
    %v198 = vmul.f32 %v189, 0.5
    %v199 = vmul.f32 %v191, 0.5
    %v200 = vmul.f32 %v194, 0.5
    %v201 = vmul.f32 %v196, 0.5
    %v202 = vtanh.pop %v198
    %v203 = vtanh.pop %v199
    %v204 = vtanh.pop %v200
    %v205 = vtanh.pop %v201
    %v206 = vadd.f32 %v202, 1.0
    %v207 = vadd.f32 %v203, 1.0
    %v208 = vadd.f32 %v204, 1.0
    %v209 = vadd.f32 %v205, 1.0
    %v210 = vmul.f32 %v206, 0.5
    %v211 = vmul.f32 %v207, 0.5
    %v212 = vmul.f32 %v208, 0.5
    %v213 = vmul.f32 %v209, 0.5
    %v214 = vmul.f32 %v189, %v210
    %v215 = vmul.f32 %v191, %v211
    %v216 = vmul.f32 %v194, %v212
    %v217 = vmul.f32 %v196, %v213
    %218 = vset.pattern.permute.xlu0 2
    %219 = vperm.xlu0 %218, %v139
    %v220 = vpop.permute.xlu0 %219
    %222 = vset.pattern.permute.xlu0 2
    %223 = vperm.xlu0 %222, %v140
    %v224 = vpop.permute.xlu0 %223
    %226 = vset.pattern.permute.xlu0 2
    %227 = vperm.xlu0 %226, %v141
    %v228 = vpop.permute.xlu0 %227
    %230 = vset.pattern.permute.xlu0 2
    %231 = vperm.xlu0 %230, %v142
    %v232 = vpop.permute.xlu0 %231
    %v234 = vmul.f32 %v214, %v220
    %v235 = vmul.f32 %v215, %v224
    %v236 = vmul.f32 %v216, %v228
    %v237 = vmul.f32 %v217, %v232
    %v238 = vsel %vm125, %v234, 0.0
    %v239 = vsel %vm125, %v235, 0.0
    %v240 = vadd.f32 %v238, %v239
    %v241 = vsel %vm125, %v236, 0.0
    %v242 = vadd.f32 %v240, %v241
    %v243 = vsel %vm125, %v237, 0.0
    %v244 = vadd.f32 %v242, %v243
    %v245 = vrot.slane %v244, 4
    %v246 = vadd.f32 %v244, %v245
    %v247 = vrot.slane %v246, 2
    %v248 = vadd.f32 %v246, %v247
    %v249 = vrot.slane %v248, 1
    %v250 = vadd.f32 %v248, %v249
    %v251 = vadd.f32 %v250, %v132
    %vm252 = vcmask 57344
    %253 = vst.msk [vmem:[#allocation2] sm:$0x1] %vm252, %v251
    // Predicated region
    $region18: #{tpu_custom_call.1} parent=1 // pred_check
      _
    $region19: #{tpu_custom_call.1} parent=1 // pred_check_branch
      %255 = sbr.rel (0) target = $region21
    $region20: #{tpu_custom_call.1} parent=1 // pred_region
      %257 = vsyncadd [#allocation3], 0
      %s259 = sshll.u32 [#allocation2], 4
      %s260 = int_to_ptr.vmem [resolvable:$true] %s259
      %s261 = sshll.u32 %s4, 4
      %s262 = int_to_ptr.hbm [resolvable:$true] %s261
      %264 = dma.vmem_to_hbm [thread:$0]  %s260, 16, %s262, [#allocation3]
    $region21: #{tpu_custom_call.1} parent=1 // pred_fallthru
      _
    // Predicated region
    $region22: #{tpu_custom_call.1} parent=1 // pred_check
      _
    $region23: #{tpu_custom_call.1} parent=1 // pred_check_branch
      %266 = sbr.rel (0) target = $region25
    $region24: #{tpu_custom_call.1} parent=1 // pred_region
      %268 = dma.done [#allocation3], 16
    $region25: #{tpu_custom_call.1} parent=1 // pred_fallthru
      _
    %269 = vsyncpa [#allocation3], 1

</llo_original>
